<compile_context>
chip_gen: v7x
topology: tpu7x:2x2x1
jax: 0.10.0
libtpu: 0.0.40
codegen_flags: <defaults>
</compile_context>

<pallas_src>
import jax
import jax.numpy as jnp
from jax.experimental import pallas as pl
from jax.experimental.pallas import tpu as pltpu


def _round_up(v, m):
    return ((v + m - 1) // m) * m


def hyper_net_kernel(x_ref, w1_ref, b1_ref, w2_ref, b2_ref, o_ref):
    """tanh(relu(x @ w1 + b1) @ w2 + b2) on whole-array VMEM blocks.

    Body is 2 MXU matmuls, bias adds + ReLU on the (otherwise idle) VPU, and
    tanh on the EUP.  Padded feature columns are zero in w1/b1 and padded
    rows of w2 are zero, so padding contributes nothing to the real outputs.
    """
    h = jnp.dot(x_ref[...], w1_ref[...], preferred_element_type=jnp.float32)
    h = jnp.maximum(h + b1_ref[...], 0.0)
    y = jnp.dot(h, w2_ref[...], preferred_element_type=jnp.float32) + b2_ref[...]
    o_ref[...] = jnp.tanh(y).astype(o_ref.dtype)


def prepare_fumi_params(w1, b1, w2, b2):
    """One-time padding of the hyper-net weights to (8,128)-legal shapes.

    Returns (w1_pad, b1_pad, w2_pad, b2_pad) with:
      w1_pad: (emb_pad, hid_pad)   b1_pad: (1, hid_pad)
      w2_pad: (hid_pad, out_pad)   b2_pad: (1, out_pad)
    Keep this OUT of the per-call path.
    """
    emb, hid = w1.shape
    out = w2.shape[1]
    emb_pad = _round_up(emb, 128)
    hid_pad = _round_up(hid, 128)
    out_pad = _round_up(out, 128)

    w1_pad = jnp.pad(w1, ((0, emb_pad - emb), (0, hid_pad - hid)))
    b1_pad = jnp.pad(b1, (0, hid_pad - hid))[None, :]
    w2_pad = jnp.pad(w2, ((0, hid_pad - hid), (0, out_pad - out)))
    b2_pad = jnp.pad(b2, (0, out_pad - out))[None, :]
    return w1_pad, b1_pad, w2_pad, b2_pad


def make_fumi_forward(w1, b1, w2, b2):
    """Build a jitted forward(text_embed) with weight prep hoisted out."""
    emb, _ = w1.shape
    out = w2.shape[1]
    w1_pad, b1_pad, w2_pad, b2_pad = prepare_fumi_params(w1, b1, w2, b2)
    emb_pad, hid_pad = w1_pad.shape
    out_pad = w2_pad.shape[1]
    itemsize = jnp.dtype(w1.dtype).itemsize
    weight_bytes = itemsize * (w1_pad.size + b1_pad.size + w2_pad.size + b2_pad.size)

    vmem_spec = pl.BlockSpec(memory_space=pltpu.MemorySpace.VMEM)

    @jax.jit
    def forward(text_embed):
        # Accept (N, emb) or (B, N, emb); flatten all leading axes into rows.
        lead_shape = text_embed.shape[:-1]
        rows = 1
        for d in lead_shape:
            rows *= d
        x_flat = text_embed.reshape(rows, emb)

        rows_pad = _round_up(rows, 8)
        x_pad = jnp.pad(x_flat, ((0, rows_pad - rows), (0, emb_pad - emb)))

        cost = pl.CostEstimate(
            flops=2 * rows_pad * (emb_pad * hid_pad + hid_pad * out_pad),
            transcendentals=rows_pad * out_pad,
            bytes_accessed=(itemsize * (x_pad.size + rows_pad * out_pad)
                            + weight_bytes),
        )

        y_pad = pl.pallas_call(
            hyper_net_kernel,
            out_shape=jax.ShapeDtypeStruct((rows_pad, out_pad), text_embed.dtype),
            in_specs=[vmem_spec] * 5,
            out_specs=vmem_spec,
            cost_estimate=cost,
        )(x_pad, w1_pad, b1_pad, w2_pad, b2_pad)

        return y_pad[:rows, :out].reshape(*lead_shape, out)

    return forward


def init_fumi_params(key, text_emb_dim, text_hid_dim, im_hid_last):
    """Deterministic synthetic init mirroring nn.Linear (stored as (in, out))."""
    k1, k2, k3, k4 = jax.random.split(key, 4)
    out_dim = im_hid_last + 1
    s1 = 1.0 / jnp.sqrt(jnp.float32(text_emb_dim))
    s2 = 1.0 / jnp.sqrt(jnp.float32(text_hid_dim))
    w1 = jax.random.uniform(k1, (text_emb_dim, text_hid_dim), jnp.float32, -s1, s1)
    b1 = jax.random.uniform(k2, (text_hid_dim,), jnp.float32, -s1, s1)
    w2 = jax.random.uniform(k3, (text_hid_dim, out_dim), jnp.float32, -s2, s2)
    b2 = jax.random.uniform(k4, (out_dim,), jnp.float32, -s2, s2)
    return w1, b1, w2, b2


if __name__ == "__main__":
    # Shapes consistent with the module: meta-batch of B=4 tasks,
    # n_way=5 classes per task, text_emb_dim=32, text_hid_dim=64,
    # im_hid_dim=[16] -> output dim 17.
    B = 4
    n_way = 5
    text_emb_dim = 32
    text_hid_dim = 64
    im_hid_last = 16

    key = jax.random.PRNGKey(0)
    k_in, k_params = jax.random.split(key)
    text_embed = jax.random.normal(k_in, (B, n_way, text_emb_dim), jnp.float32)
    w1, b1, w2, b2 = init_fumi_params(k_params, text_emb_dim, text_hid_dim, im_hid_last)

    fumi_forward = make_fumi_forward(w1, b1, w2, b2)

    out = jax.block_until_ready(fumi_forward(text_embed))

    # Pure-JAX reference check of the fused kernel.
    ref = jnp.tanh(jnp.maximum(text_embed @ w1 + b1, 0.0) @ w2 + b2)
    assert out.shape == (B, n_way, im_hid_last + 1)
    assert jnp.allclose(out, ref, atol=1e-5, rtol=1e-5)

    # Also exercise the un-batched (single task) path used by get_hyper_params.
    out1 = jax.block_until_ready(fumi_forward(text_embed[0]))
    assert out1.shape == (n_way, im_hid_last + 1)
    assert jnp.allclose(out1, ref[0], atol=1e-5, rtol=1e-5)

    print("KERNEL_OK")
</pallas_src>

<mosaic_0001>
module attributes {stable_mosaic.version = 11 : i64} {
  func.func @hyper_net_kernel(%arg0: memref<24x128xf32, #tpu.memory_space<vmem>>, %arg1: memref<128x128xf32, #tpu.memory_space<vmem>>, %arg2: memref<1x128xf32, #tpu.memory_space<vmem>>, %arg3: memref<128x128xf32, #tpu.memory_space<vmem>>, %arg4: memref<1x128xf32, #tpu.memory_space<vmem>>, %arg5: memref<24x128xf32, #tpu.memory_space<vmem>>) attributes {dimension_semantics = [], scalar_prefetch = 0 : i64, scratch_operands = 0 : i64, tpu.core_type = #tpu.core_type<tc>} {
    %c0 = arith.constant 0 : index
    %c0_0 = arith.constant 0 : index
    %0 = vector.load %arg0[%c0, %c0_0] : memref<24x128xf32, #tpu.memory_space<vmem>>, vector<24x128xf32>
    %c0_1 = arith.constant 0 : index
    %c0_2 = arith.constant 0 : index
    %1 = vector.load %arg1[%c0_1, %c0_2] : memref<128x128xf32, #tpu.memory_space<vmem>>, vector<128x128xf32>
    %cst = arith.constant dense<0.000000e+00> : vector<24x128xf32>
    %2 = tpu.matmul %0, %1, %cst {dimension_numbers = #tpu.dot_dimension_numbers<[1], [0], [0], [1], [0, 0, 1, 1], [], []>} : vector<24x128xf32>, vector<128x128xf32>, vector<24x128xf32> -> vector<24x128xf32>
    %c0_3 = arith.constant 0 : index
    %c0_4 = arith.constant 0 : index
    %3 = vector.load %arg2[%c0_3, %c0_4] : memref<1x128xf32, #tpu.memory_space<vmem>>, vector<1x128xf32>
    %4 = vector.broadcast %3 : vector<1x128xf32> to vector<24x128xf32>
    %5 = arith.addf %2, %4 : vector<24x128xf32>
    %cst_5 = arith.constant 0.000000e+00 : f32
    %6 = vector.broadcast %cst_5 : f32 to vector<24x128xf32>
    %7 = arith.maximumf %5, %6 : vector<24x128xf32>
    %c0_6 = arith.constant 0 : index
    %c0_7 = arith.constant 0 : index
    %8 = vector.load %arg3[%c0_6, %c0_7] : memref<128x128xf32, #tpu.memory_space<vmem>>, vector<128x128xf32>
    %cst_8 = arith.constant dense<0.000000e+00> : vector<24x128xf32>
    %9 = tpu.matmul %7, %8, %cst_8 {dimension_numbers = #tpu.dot_dimension_numbers<[1], [0], [0], [1], [0, 0, 1, 1], [], []>} : vector<24x128xf32>, vector<128x128xf32>, vector<24x128xf32> -> vector<24x128xf32>
    %c0_9 = arith.constant 0 : index
    %c0_10 = arith.constant 0 : index
    %10 = vector.load %arg4[%c0_9, %c0_10] : memref<1x128xf32, #tpu.memory_space<vmem>>, vector<1x128xf32>
    %11 = vector.broadcast %10 : vector<1x128xf32> to vector<24x128xf32>
    %12 = arith.addf %9, %11 : vector<24x128xf32>
    %13 = math.tanh %12 : vector<24x128xf32>
    %c0_11 = arith.constant 0 : index
    %c0_12 = arith.constant 0 : index
    %14 = vector.load %arg5[%c0_11, %c0_12] : memref<24x128xf32, #tpu.memory_space<vmem>>, vector<24x128xf32>
    tpu.vector_store %arg5[%c0_11, %c0_12], %13 {strides = array<i32>} : memref<24x128xf32, #tpu.memory_space<vmem>>, vector<24x128xf32>,
    return
  }
}

</mosaic_0001>

<llo_original>
// kernel: forward.1
$region0: #{forward.1}
  #allocation0 [shape = 'u32[]', space=smem, size = 0x4, offset = 0x4, fixed_abs, tag = 'smem constant byte address 0x4 - core index']
  #allocation1 [shape = 'u32[144,128]{1,0:T(1,128)}', space=vmem, size = 0x12000, scoped, tag = 'internal scratch']
  %s0 = inlined_call_operand.vmem [shape: f32[24,128], index: 0, kind: input, shape index: {}]
  %s1 = inlined_call_operand.hbm [shape: f32[128,128], index: 1, kind: input, shape index: {}]
  %s2 = inlined_call_operand.vmem [shape: f32[1,128], index: 2, kind: input, shape index: {}]
  %s3 = inlined_call_operand.vmem [shape: f32[128,128], index: 3, kind: input, shape index: {}]
  %s4 = inlined_call_operand.vmem [shape: f32[1,128], index: 4, kind: input, shape index: {}]
  %s5 = inlined_call_operand.vmem [shape: f32[24,128], index: 5, kind: output, shape index: {}]
  %s6 = sld [smem:[#allocation0]]
  $region34: #{forward.1} parent=0
    _
  %s8 = ssub.s32 1, %s6
  %s9 = scalar_select 0, %s8, %s6
  $region1: #{forward.1} parent=0
    #allocation2 [shape = 'u8[65536]{0}', space=vmem, size = 0x10000, scoped, tag = 'input window, operand 1, single buffered']
    #allocation3 [shape = 's32[1]{0}', space=sflag, size = 0x4, scoped, tag = 'scoped memory for forward.1']
    %10 = vsyncpa [#allocation3], 0
    // Predicated region
    $region2: #{forward.1} parent=1 // pred_check
      _
    $region3: #{forward.1} parent=1 // pred_check_branch
      %12 = sbr.rel (0) target = $region5
    $region4: #{forward.1} parent=1 // pred_region
      _
    $region5: #{forward.1} parent=1 // pred_fallthru
      _
    // Predicated region
    $region6: #{forward.1} parent=1 // pred_check
      _
    $region7: #{forward.1} parent=1 // pred_check_branch
      %14 = sbr.rel (0) target = $region9
    $region8: #{forward.1} parent=1 // pred_region
      %s16 = ssub.s32 2048, 2048
      %17 = vsyncadd [#allocation3], %s16
      %s18 = sshll.u32 [#allocation2], 4
      %s19 = int_to_ptr.vmem [resolvable:$true] %s18
      %24 = dma.hbm_to_vmem [thread:$0]  %s1, 2048, %s19, [#allocation3], 128, 128, 8
    $region9: #{forward.1} parent=1 // pred_fallthru
      _
    // Predicated region
    $region10: #{forward.1} parent=1 // pred_check
      _
    $region11: #{forward.1} parent=1 // pred_check_branch
      %26 = sbr.rel (0) target = $region13
    $region12: #{forward.1} parent=1 // pred_region
      _
    $region13: #{forward.1} parent=1 // pred_fallthru
      _
    // Predicated region
    $region14: #{forward.1} parent=1 // pred_check
      _
    $region15: #{forward.1} parent=1 // pred_check_branch
      %28 = sbr.rel (0) target = $region17
    $region16: #{forward.1} parent=1 // pred_region
      _
    $region17: #{forward.1} parent=1 // pred_fallthru
      _
    // Predicated region
    $region18: #{forward.1} parent=1 // pred_check
      _
    $region19: #{forward.1} parent=1 // pred_check_branch
      %30 = sbr.rel (0) target = $region21
    $region20: #{forward.1} parent=1 // pred_region
      _
    $region21: #{forward.1} parent=1 // pred_fallthru
      _
    // Predicated region
    $region22: #{forward.1} parent=1 // pred_check
      _
    $region23: #{forward.1} parent=1 // pred_check_branch
      %32 = sbr.rel (0) target = $region25
    $region24: #{forward.1} parent=1 // pred_region
      %33 = dma.done [#allocation3], 2048
    $region25: #{forward.1} parent=1 // pred_fallthru
      _
    %v34 = vld [vmem:[%s0] sm:$0xff]
    %v35 = vld [vmem:[%s0 + $0x8] sm:$0xff]
    %v36 = vld [vmem:[%s0 + $0x10] sm:$0xff]
    %v37 = vld [vmem:[#allocation2] sm:$0xff]
    %v38 = vld [vmem:[#allocation2 + $0x8] sm:$0xff]
    %v39 = vld [vmem:[#allocation2 + $0x10] sm:$0xff]
    %v40 = vld [vmem:[#allocation2 + $0x18] sm:$0xff]
    %v41 = vld [vmem:[#allocation2 + $0x20] sm:$0xff]
    %v42 = vld [vmem:[#allocation2 + $0x28] sm:$0xff]
    %v43 = vld [vmem:[#allocation2 + $0x30] sm:$0xff]
    %v44 = vld [vmem:[#allocation2 + $0x38] sm:$0xff]
    %v45 = vld [vmem:[#allocation2 + $0x40] sm:$0xff]
    %v46 = vld [vmem:[#allocation2 + $0x48] sm:$0xff]
    %v47 = vld [vmem:[#allocation2 + $0x50] sm:$0xff]
    %v48 = vld [vmem:[#allocation2 + $0x58] sm:$0xff]
    %v49 = vld [vmem:[#allocation2 + $0x60] sm:$0xff]
    %v50 = vld [vmem:[#allocation2 + $0x68] sm:$0xff]
    %v51 = vld [vmem:[#allocation2 + $0x70] sm:$0xff]
    %v52 = vld [vmem:[#allocation2 + $0x78] sm:$0xff]
    %v53 = vld [vmem:[%s2] sm:$0x1]
    %v55 = vlaneseq
    %v56 = vshrl.u32 %v55, 7
    %v57 = vsub.s32 0, %v56
    %v58 = vrot.slane %v53, %v57
    %60 = vmatprep.subr.mxu0 0.0
    %61 = vmatpush1.msra.mxu0 %v37
    %62 = vmatprep.subr.mxu0 0.0
    %63 = vmatpush1.msra.mxu0 %v38
    %64 = vmatprep.subr.mxu0 0.0
    %65 = vmatpush1.msra.mxu0 %v39
    %66 = vmatprep.subr.mxu0 0.0
    %67 = vmatpush1.msra.mxu0 %v40
    %68 = vmatprep.subr.mxu0 0.0
    %69 = vmatpush1.msra.mxu0 %v41
    %70 = vmatprep.subr.mxu0 0.0
    %71 = vmatpush1.msra.mxu0 %v42
    %72 = vmatprep.subr.mxu0 0.0
    %73 = vmatpush1.msra.mxu0 %v43
    %74 = vmatprep.subr.mxu0 0.0
    %75 = vmatpush1.msra.mxu0 %v44
    %76 = vmatprep.subr.mxu0 0.0
    %77 = vmatpush1.msra.mxu0 %v45
    %78 = vmatprep.subr.mxu0 0.0
    %79 = vmatpush1.msra.mxu0 %v46
    %80 = vmatprep.subr.mxu0 0.0
    %81 = vmatpush1.msra.mxu0 %v47
    %82 = vmatprep.subr.mxu0 0.0
    %83 = vmatpush1.msra.mxu0 %v48
    %84 = vmatprep.subr.mxu0 0.0
    %85 = vmatpush1.msra.mxu0 %v49
    %86 = vmatprep.subr.mxu0 0.0
    %87 = vmatpush1.msra.mxu0 %v50
    %88 = vmatprep.subr.mxu0 0.0
    %89 = vmatpush1.msra.mxu0 %v51
    %90 = vmatprep.subr.mxu0 0.0
    %91 = vmatpush1.msra.mxu0 %v52
    %92 = vmatprep.subr.mxu0 0.0
    %93 = vmatpush1.msra.mxu0 0.0
    %94 = vmatprep.subr.mxu0 0.0
    %95 = vmatpush1.msra.mxu0 0.0
    %96 = vmatprep.subr.mxu0 0.0
    %97 = vmatpush1.msra.mxu0 0.0
    %98 = vmatprep.subr.mxu0 0.0
    %99 = vmatpush1.msra.mxu0 0.0
    %100 = vmatprep.subr.mxu0 0.0
    %101 = vmatpush1.msra.mxu0 0.0
    %102 = vmatprep.subr.mxu0 0.0
    %103 = vmatpush1.msra.mxu0 0.0
    %104 = vmatprep.subr.mxu0 0.0
    %105 = vmatpush1.msra.mxu0 0.0
    %106 = vmatprep.subr.mxu0 0.0
    %107 = vmatpush1.msra.mxu0 0.0
    %108 = vmatprep.subr.mxu0 0.0
    %109 = vmatpush1.msra.mxu0 0.0
    %110 = vmatprep.subr.mxu0 0.0
    %111 = vmatpush1.msra.mxu0 0.0
    %112 = vmatprep.subr.mxu0 0.0
    %113 = vmatpush1.msra.mxu0 0.0
    %114 = vmatprep.subr.mxu0 0.0
    %115 = vmatpush1.msra.mxu0 0.0
    %116 = vmatprep.subr.mxu0 0.0
    %117 = vmatpush1.msra.mxu0 0.0
    %118 = vmatprep.subr.mxu0 0.0
    %119 = vmatpush1.msra.mxu0 0.0
    %120 = vmatprep.subr.mxu0 0.0
    %121 = vmatpush1.msra.mxu0 0.0
    %122 = vmatprep.subr.mxu0 0.0
    %123 = vmatpush1.msra.mxu0 0.0
    %124 = vmatprep.mubr.f32.mxu0 0.0
    %125 = vmatmul.mubr.f32.gmra.mrb[0].mxu0 %v34
    %v126 = vpop.f32.mrb[0].mxu0
    %v127 = vadd.f32 %v58, %v126
    %v128 = vpop.f32.mrb[0].mxu0
    %129 = vmatprep.mubr.f32.mxu0 0.0
    %130 = vmatmul.mubr.f32.gmra.mrb[0].mxu0 %v35
    %v131 = vpop.f32.mrb[0].mxu0
    %v132 = vadd.f32 %v58, %v131
    %v133 = vpop.f32.mrb[0].mxu0
    %134 = vmatprep.mubr.f32.mxu0 0.0
    %135 = vmatmul.mubr.f32.gmra.mrb[0].mxu0 %v36
    %v136 = vpop.f32.mrb[0].mxu0
    %v137 = vadd.f32 %v58, %v136
    %v138 = vpop.f32.mrb[0].mxu0
    %139 = vdwg.mxu0
    %v140 = vmax.f32 %v127, 0.0
    %v141 = vmax.f32 %v132, 0.0
    %v142 = vmax.f32 %v137, 0.0
    %v143 = vld [vmem:[%s3] sm:$0xff]
    %v144 = vld [vmem:[%s3 + $0x8] sm:$0xff]
    %v145 = vld [vmem:[%s3 + $0x10] sm:$0xff]
    %v146 = vld [vmem:[%s3 + $0x18] sm:$0xff]
    %v147 = vld [vmem:[%s3 + $0x20] sm:$0xff]
    %v148 = vld [vmem:[%s3 + $0x28] sm:$0xff]
    %v149 = vld [vmem:[%s3 + $0x30] sm:$0xff]
    %v150 = vld [vmem:[%s3 + $0x38] sm:$0xff]
    %v151 = vld [vmem:[%s3 + $0x40] sm:$0xff]
    %v152 = vld [vmem:[%s3 + $0x48] sm:$0xff]
    %v153 = vld [vmem:[%s3 + $0x50] sm:$0xff]
    %v154 = vld [vmem:[%s3 + $0x58] sm:$0xff]
    %v155 = vld [vmem:[%s3 + $0x60] sm:$0xff]
    %v156 = vld [vmem:[%s3 + $0x68] sm:$0xff]
    %v157 = vld [vmem:[%s3 + $0x70] sm:$0xff]
    %v158 = vld [vmem:[%s3 + $0x78] sm:$0xff]
    %v159 = vld [vmem:[%s4] sm:$0x1]
    %v161 = vlaneseq
    %v162 = vshrl.u32 %v161, 7
    %v163 = vsub.s32 0, %v162
    %v164 = vrot.slane %v159, %v163
    %166 = vmatprep.subr.mxu0 0.0
    %167 = vmatpush1.msra.mxu0 %v143
    %168 = vmatprep.subr.mxu0 0.0
    %169 = vmatpush1.msra.mxu0 %v144
    %170 = vmatprep.subr.mxu0 0.0
    %171 = vmatpush1.msra.mxu0 %v145
    %172 = vmatprep.subr.mxu0 0.0
    %173 = vmatpush1.msra.mxu0 %v146
    %174 = vmatprep.subr.mxu0 0.0
    %175 = vmatpush1.msra.mxu0 %v147
    %176 = vmatprep.subr.mxu0 0.0
    %177 = vmatpush1.msra.mxu0 %v148
    %178 = vmatprep.subr.mxu0 0.0
    %179 = vmatpush1.msra.mxu0 %v149
    %180 = vmatprep.subr.mxu0 0.0
    %181 = vmatpush1.msra.mxu0 %v150
    %182 = vmatprep.subr.mxu0 0.0
    %183 = vmatpush1.msra.mxu0 %v151
    %184 = vmatprep.subr.mxu0 0.0
    %185 = vmatpush1.msra.mxu0 %v152
    %186 = vmatprep.subr.mxu0 0.0
    %187 = vmatpush1.msra.mxu0 %v153
    %188 = vmatprep.subr.mxu0 0.0
    %189 = vmatpush1.msra.mxu0 %v154
    %190 = vmatprep.subr.mxu0 0.0
    %191 = vmatpush1.msra.mxu0 %v155
    %192 = vmatprep.subr.mxu0 0.0
    %193 = vmatpush1.msra.mxu0 %v156
    %194 = vmatprep.subr.mxu0 0.0
    %195 = vmatpush1.msra.mxu0 %v157
    %196 = vmatprep.subr.mxu0 0.0
    %197 = vmatpush1.msra.mxu0 %v158
    %198 = vmatprep.subr.mxu0 0.0
    %199 = vmatpush1.msra.mxu0 0.0
    %200 = vmatprep.subr.mxu0 0.0
    %201 = vmatpush1.msra.mxu0 0.0
    %202 = vmatprep.subr.mxu0 0.0
    %203 = vmatpush1.msra.mxu0 0.0
    %204 = vmatprep.subr.mxu0 0.0
    %205 = vmatpush1.msra.mxu0 0.0
    %206 = vmatprep.subr.mxu0 0.0
    %207 = vmatpush1.msra.mxu0 0.0
    %208 = vmatprep.subr.mxu0 0.0
    %209 = vmatpush1.msra.mxu0 0.0
    %210 = vmatprep.subr.mxu0 0.0
    %211 = vmatpush1.msra.mxu0 0.0
    %212 = vmatprep.subr.mxu0 0.0
    %213 = vmatpush1.msra.mxu0 0.0
    %214 = vmatprep.subr.mxu0 0.0
    %215 = vmatpush1.msra.mxu0 0.0
    %216 = vmatprep.subr.mxu0 0.0
    %217 = vmatpush1.msra.mxu0 0.0
    %218 = vmatprep.subr.mxu0 0.0
    %219 = vmatpush1.msra.mxu0 0.0
    %220 = vmatprep.subr.mxu0 0.0
    %221 = vmatpush1.msra.mxu0 0.0
    %222 = vmatprep.subr.mxu0 0.0
    %223 = vmatpush1.msra.mxu0 0.0
    %224 = vmatprep.subr.mxu0 0.0
    %225 = vmatpush1.msra.mxu0 0.0
    %226 = vmatprep.subr.mxu0 0.0
    %227 = vmatpush1.msra.mxu0 0.0
    %228 = vmatprep.subr.mxu0 0.0
    %229 = vmatpush1.msra.mxu0 0.0
    %230 = vmatprep.mubr.f32.mxu0 0.0
    %231 = vmatmul.mubr.f32.gmra.mrb[0].mxu0 %v140
    %v232 = vpop.f32.mrb[0].mxu0
    %v233 = vadd.f32 %v164, %v232
    %v234 = vpop.f32.mrb[0].mxu0
    %235 = vmatprep.mubr.f32.mxu0 0.0
    %236 = vmatmul.mubr.f32.gmra.mrb[0].mxu0 %v141
    %v237 = vpop.f32.mrb[0].mxu0
    %v238 = vadd.f32 %v164, %v237
    %v239 = vpop.f32.mrb[0].mxu0
    %240 = vmatprep.mubr.f32.mxu0 0.0
    %241 = vmatmul.mubr.f32.gmra.mrb[0].mxu0 %v142
    %v242 = vpop.f32.mrb[0].mxu0
    %v243 = vadd.f32 %v164, %v242
    %v244 = vpop.f32.mrb[0].mxu0
    %245 = vdwg.mxu0
    %v246 = vtanh.pop %v233
    %v247 = vtanh.pop %v238
    %v248 = vtanh.pop %v243
    %249 = vst [vmem:[%s5] sm:$0xff] %v246
    %250 = vst [vmem:[%s5 + $0x8] sm:$0xff] %v247
    %251 = vst [vmem:[%s5 + $0x10] sm:$0xff] %v248
    // Predicated region
    $region26: #{forward.1} parent=1 // pred_check
      _
    $region27: #{forward.1} parent=1 // pred_check_branch
      %253 = sbr.rel (0) target = $region29
    $region28: #{forward.1} parent=1 // pred_region
      _
    $region29: #{forward.1} parent=1 // pred_fallthru
      _
    // Predicated region
    $region30: #{forward.1} parent=1 // pred_check
      _
    $region31: #{forward.1} parent=1 // pred_check_branch
      %255 = sbr.rel (0) target = $region33
    $region32: #{forward.1} parent=1 // pred_region
      _
    $region33: #{forward.1} parent=1 // pred_fallthru
      _
    %256 = vsyncpa [#allocation3], 1

</llo_original>
